<compile_context>
chip_gen: v7x
topology: tpu7x:2x2x1
jax: 0.10.0
libtpu: 0.0.40
codegen_flags: <defaults>
</compile_context>

<pallas_src>
import jax
import jax.numpy as jnp
from jax import lax
from jax.experimental import pallas as pl
from jax.experimental.pallas import tpu as pltpu


def rnn_actor_qmix_chunk_kernel(
    x_ref,                 # [Tc, B, D]   time-chunk of observations
    h0_ref,                # [B, H]       initial hidden (read only at chunk 0)
    w0_ref, b0_ref,        # Dense_0: [D, H], [1, H]
    wstk_ref, bstk_ref,    # fused GRU: [2H, 4*GP], [1, 4*GP]  (z | r | hx | hh)
    w1_ref, b1_ref,        # Dense_1: [H, O], [1, O]
    out_ref,               # [Tc, B, O]   time-chunk of outputs
    hout_ref,              # [B, H]       resident hidden accumulator / final hidden
):
    chunk = pl.program_id(0)
    Tc = x_ref.shape[0]
    H = hout_ref.shape[-1]
    GP = wstk_ref.shape[-1] // 4   # lane-aligned per-gate width

    # Initialize the resident hidden block from h0 on the first chunk only.
    @pl.when(chunk == 0)
    def _():
        hout_ref[...] = h0_ref[...]

    # Weights are resident in VMEM (constant index_maps); hoist loads out of
    # the timestep loop.
    w0 = w0_ref[...]
    b0 = b0_ref[...]
    w_stk = wstk_ref[...]
    b_stk = bstk_ref[...]
    w1 = w1_ref[...]
    b1 = b1_ref[...]

    def step(tc, h):
        x = x_ref[tc]                                            # [B, D]
        # Dense_0 + ReLU
        emb = jnp.maximum(
            jnp.dot(x, w0, preferred_element_type=jnp.float32) + b0, 0.0)
        # Single fused GRU matmul: [B, 2H] @ [2H, 4*GP]
        xh = jnp.concatenate([emb, h], axis=-1)                  # [B, 2H]
        g = jnp.dot(xh, w_stk, preferred_element_type=jnp.float32) + b_stk
        z = jax.nn.sigmoid(g[:, 0:H])                            # emb@Wz + h@Uz + bz
        r = jax.nn.sigmoid(g[:, GP:GP + H])                      # emb@Wr + h@Ur + br
        h_tilde = jnp.tanh(
            g[:, 2 * GP:2 * GP + H]                              # emb@Wh + b_ih
            + r * g[:, 3 * GP:3 * GP + H])                       # r*(h@Uh + b_hh)
        h_t = h_tilde + z * (h - h_tilde)                        # == (1-z)*h_tilde + z*h
        # Dense_1 (out_dim-wide masked store; no lane padding / post-slice)
        out_ref[tc] = (
            jnp.dot(h_t, w1, preferred_element_type=jnp.float32) + b1
        ).astype(out_ref.dtype)
        return h_t

    # Hidden carried in vregs across the chunk; single VMEM write at the end.
    hout_ref[...] = lax.fori_loop(0, Tc, step, hout_ref[...], unroll=True)


def _pack_params(params):
    """Build the fused GRU weight/bias.

    Columns (each lane-padded to GP = round_up(H, 128)):
      z : [Wz; Uz]     r : [Wr; Ur]     hx : [Wh; 0]     hh : [0; Uh]
    Bias: [bz | br | b_ih | b_hh]. Keeping hx/hh separate preserves the
    r-gated candidate term exactly.
    """
    H = params["Wz"].shape[1]
    GP = ((H + 127) // 128) * 128
    pad = GP - H
    Z = jnp.zeros_like(params["Uz"])

    def col(top, bot):
        c = jnp.concatenate([top, bot], axis=0)          # [2H, H]
        return jnp.pad(c, ((0, 0), (0, pad)))            # [2H, GP]

    def pb(b):
        return jnp.pad(b, ((0, 0), (0, pad)))            # [1, GP]

    w_stk = jnp.concatenate(
        [col(params["Wz"], params["Uz"]),
         col(params["Wr"], params["Ur"]),
         col(params["Wh"], Z),
         col(Z, params["Uh"])], axis=1)                  # [2H, 4*GP]
    b_stk = jnp.concatenate(
        [pb(params["bz"]), pb(params["br"]),
         pb(params["bih"]), pb(params["bhh"])], axis=1)  # [1, 4*GP]
    return w_stk, b_stk


def _choose_chunk(T, max_chunk):
    tc = min(T, max_chunk)
    while T % tc:
        tc -= 1
    return tc


def rnn_actor_qmix_seq(xs, h0, params, *, max_chunk=8):
    """Fused T-step rollout. xs: [T, B, D], h0: [B, H].
    Returns (outputs [T, B, output_dim], final hidden [B, H])."""
    T, B, D = xs.shape
    H = h0.shape[1]
    O = params["w1"].shape[1]
    Tc = _choose_chunk(T, max_chunk)
    w_stk, b_stk = _pack_params(params)

    grid_spec = pltpu.PrefetchScalarGridSpec(
        num_scalar_prefetch=0,
        grid=(T // Tc,),
        in_specs=[
            pl.BlockSpec((Tc, B, D), lambda c: (c, 0, 0)),           # x chunk
            pl.BlockSpec((B, H), lambda c: (0, 0)),                  # h0 (resident)
            pl.BlockSpec((D, H), lambda c: (0, 0)),                  # w0 (resident)
            pl.BlockSpec((1, H), lambda c: (0, 0)),                  # b0
            pl.BlockSpec((2 * H, w_stk.shape[1]), lambda c: (0, 0)), # W_stack
            pl.BlockSpec((1, b_stk.shape[1]), lambda c: (0, 0)),     # b_stack
            pl.BlockSpec((H, O), lambda c: (0, 0)),                  # w1
            pl.BlockSpec((1, O), lambda c: (0, 0)),                  # b1
        ],
        out_specs=[
            pl.BlockSpec((Tc, B, O), lambda c: (c, 0, 0)),           # per-chunk outputs
            pl.BlockSpec((B, H), lambda c: (0, 0)),                  # final hidden (resident)
        ],
    )

    outs, h_new = pl.pallas_call(
        rnn_actor_qmix_chunk_kernel,
        grid_spec=grid_spec,
        out_shape=(
            jax.ShapeDtypeStruct((T, B, O), jnp.float32),
            jax.ShapeDtypeStruct((B, H), jnp.float32),
        ),
        compiler_params=pltpu.CompilerParams(
            # Recurrent over time: chunks must run sequentially.
            dimension_semantics=("arbitrary",),
        ),
    )(xs, h0, params["w0"], params["b0"], w_stk, b_stk,
      params["w1"], params["b1"])
    return outs, h_new


def rnn_actor_qmix(x, h, params):
    """Single forward step (matches RNNActorQMix.forward).
    x: [B, input_dim], h: [B, hidden_dim] -> (output [B, output_dim], new hidden)."""
    out_seq, h_new = rnn_actor_qmix_seq(x[None], h, params, max_chunk=1)
    return out_seq[0], h_new


def init_params(key, input_dim, hidden_dim, output_dim):
    ks = jax.random.split(key, 8)
    # Dense_0 (deterministic stand-in for PyTorch Linear init)
    w0 = jax.random.normal(ks[0], (input_dim, hidden_dim), jnp.float32) * 0.1
    b0 = jnp.zeros((1, hidden_dim), jnp.float32)
    # GRUCell params (randn * 0.01, zero biases, matching the module)
    Wz = jax.random.normal(ks[1], (hidden_dim, hidden_dim), jnp.float32) * 0.01
    Uz = jax.random.normal(ks[2], (hidden_dim, hidden_dim), jnp.float32) * 0.01
    bz = jnp.zeros((1, hidden_dim), jnp.float32)
    Wr = jax.random.normal(ks[3], (hidden_dim, hidden_dim), jnp.float32) * 0.01
    Ur = jax.random.normal(ks[4], (hidden_dim, hidden_dim), jnp.float32) * 0.01
    br = jnp.zeros((1, hidden_dim), jnp.float32)
    Wh = jax.random.normal(ks[5], (hidden_dim, hidden_dim), jnp.float32) * 0.01
    Uh = jax.random.normal(ks[6], (hidden_dim, hidden_dim), jnp.float32) * 0.01
    bih = jnp.zeros((1, hidden_dim), jnp.float32)
    bhh = jnp.zeros((1, hidden_dim), jnp.float32)
    # Dense_1
    w1 = jax.random.normal(ks[7], (hidden_dim, output_dim), jnp.float32) * 0.1
    b1 = jnp.zeros((1, output_dim), jnp.float32)
    return dict(w0=w0, b0=b0, Wz=Wz, Uz=Uz, bz=bz, Wr=Wr, Ur=Ur, br=br,
                Wh=Wh, Uh=Uh, bih=bih, bhh=bhh, w1=w1, b1=b1)


def reference_step(x, h, p):
    emb = jnp.maximum(x @ p["w0"] + p["b0"], 0.0)
    r = jax.nn.sigmoid(emb @ p["Wr"] + h @ p["Ur"] + p["br"])
    z = jax.nn.sigmoid(emb @ p["Wz"] + h @ p["Uz"] + p["bz"])
    h_tilde = jnp.tanh(emb @ p["Wh"] + p["bih"] + r * (h @ p["Uh"] + p["bhh"]))
    h_t = (1.0 - z) * h_tilde + z * h
    return h_t @ p["w1"] + p["b1"], h_t


if __name__ == "__main__":
    key = jax.random.PRNGKey(0)
    k_in, k_h, k_p = jax.random.split(key, 3)

    T, B, input_dim, hidden_dim, output_dim = 8, 8, 32, 32, 8
    xs = jax.random.normal(k_in, (T, B, input_dim), jnp.float32)
    h0 = jax.random.normal(k_h, (B, hidden_dim), jnp.float32)
    params = init_params(k_p, input_dim, hidden_dim, output_dim)

    # Single step (exactly the module's forward semantics).
    out1, h1 = rnn_actor_qmix(xs[0], h0, params)
    out1 = jax.block_until_ready(out1)
    h1 = jax.block_until_ready(h1)
    out1_ref, h1_ref = reference_step(xs[0], h0, params)
    assert jnp.allclose(out1, out1_ref, atol=1e-4, rtol=1e-4)
    assert jnp.allclose(h1, h1_ref, atol=1e-4, rtol=1e-4)

    # Fused T-step rollout: Tc=4 -> grid=(2,), exercising the cross-chunk
    # hidden carry in the resident output block.
    outs, h_final = rnn_actor_qmix_seq(xs, h0, params, max_chunk=4)
    outs = jax.block_until_ready(outs)
    h_final = jax.block_until_ready(h_final)

    def scan_body(h, x):
        o, h_next = reference_step(x, h, params)
        return h_next, o

    h_final_ref, outs_ref = jax.lax.scan(scan_body, h0, xs)
    assert jnp.allclose(outs, outs_ref, atol=1e-4, rtol=1e-4)
    assert jnp.allclose(h_final, h_final_ref, atol=1e-4, rtol=1e-4)

    print("KERNEL_OK")
</pallas_src>

<mosaic_0001>
module attributes {stable_mosaic.version = 11 : i64} {
  func.func @rnn_actor_qmix_chunk_kernel(%arg0: i32, %arg1: memref<1x8x32xf32, #tpu.memory_space<vmem>>, %arg2: memref<8x32xf32, #tpu.memory_space<vmem>>, %arg3: memref<32x32xf32, #tpu.memory_space<vmem>>, %arg4: memref<1x32xf32, #tpu.memory_space<vmem>>, %arg5: memref<64x512xf32, #tpu.memory_space<vmem>>, %arg6: memref<1x512xf32, #tpu.memory_space<vmem>>, %arg7: memref<32x8xf32, #tpu.memory_space<vmem>>, %arg8: memref<1x8xf32, #tpu.memory_space<vmem>>, %arg9: memref<1x8x8xf32, #tpu.memory_space<vmem>>, %arg10: memref<8x32xf32, #tpu.memory_space<vmem>>) attributes {dimension_semantics = [#tpu.dimension_semantics<arbitrary>], iteration_bounds = array<i64: 1>, scalar_prefetch = 0 : i64, scratch_operands = 0 : i64, tpu.core_type = #tpu.core_type<tc>, window_params = [{transform_indices = @transform_0, window_bounds = array<i64: 1, 8, 32>}, {pipeline_mode = #tpu.pipeline_mode<synchronous>, transform_indices = @transform_1, window_bounds = array<i64: 8, 32>}, {pipeline_mode = #tpu.pipeline_mode<synchronous>, transform_indices = @transform_2, window_bounds = array<i64: 32, 32>}, {pipeline_mode = #tpu.pipeline_mode<synchronous>, transform_indices = @transform_3, window_bounds = array<i64: 1, 32>}, {pipeline_mode = #tpu.pipeline_mode<synchronous>, transform_indices = @transform_4, window_bounds = array<i64: 64, 512>}, {pipeline_mode = #tpu.pipeline_mode<synchronous>, transform_indices = @transform_5, window_bounds = array<i64: 1, 512>}, {pipeline_mode = #tpu.pipeline_mode<synchronous>, transform_indices = @transform_6, window_bounds = array<i64: 32, 8>}, {pipeline_mode = #tpu.pipeline_mode<synchronous>, transform_indices = @transform_7, window_bounds = array<i64: 1, 8>}, {transform_indices = @transform_8, window_bounds = array<i64: 1, 8, 8>}, {pipeline_mode = #tpu.pipeline_mode<synchronous>, transform_indices = @transform_9, window_bounds = array<i64: 8, 32>}]} {
    %c0_i32 = arith.constant 0 : i32
    %0 = arith.cmpi eq, %arg0, %c0_i32 : i32
    %1 = arith.extui %0 : i1 to i32
    %c0_i32_0 = arith.constant 0 : i32
    %2 = arith.cmpi ne, %1, %c0_i32_0 : i32
    scf.if %2 {
      %c0_26 = arith.constant 0 : index
      %c0_27 = arith.constant 0 : index
      %50 = vector.load %arg2[%c0_26, %c0_27] : memref<8x32xf32, #tpu.memory_space<vmem>>, vector<8x32xf32>
      %c0_28 = arith.constant 0 : index
      %c0_29 = arith.constant 0 : index
      %51 = vector.load %arg10[%c0_28, %c0_29] : memref<8x32xf32, #tpu.memory_space<vmem>>, vector<8x32xf32>
      tpu.vector_store %arg10[%c0_28, %c0_29], %50 {strides = array<i32>} : memref<8x32xf32, #tpu.memory_space<vmem>>, vector<8x32xf32>,
    } else {
    }
    %c0 = arith.constant 0 : index
    %c0_1 = arith.constant 0 : index
    %3 = vector.load %arg3[%c0, %c0_1] : memref<32x32xf32, #tpu.memory_space<vmem>>, vector<32x32xf32>
    %c0_2 = arith.constant 0 : index
    %c0_3 = arith.constant 0 : index
    %4 = vector.load %arg4[%c0_2, %c0_3] : memref<1x32xf32, #tpu.memory_space<vmem>>, vector<1x32xf32>
    %c0_4 = arith.constant 0 : index
    %c0_5 = arith.constant 0 : index
    %5 = vector.load %arg5[%c0_4, %c0_5] : memref<64x512xf32, #tpu.memory_space<vmem>>, vector<64x512xf32>
    %c0_6 = arith.constant 0 : index
    %c0_7 = arith.constant 0 : index
    %6 = vector.load %arg6[%c0_6, %c0_7] : memref<1x512xf32, #tpu.memory_space<vmem>>, vector<1x512xf32>
    %c0_8 = arith.constant 0 : index
    %c0_9 = arith.constant 0 : index
    %7 = vector.load %arg7[%c0_8, %c0_9] : memref<32x8xf32, #tpu.memory_space<vmem>>, vector<32x8xf32>
    %c0_10 = arith.constant 0 : index
    %c0_11 = arith.constant 0 : index
    %8 = vector.load %arg8[%c0_10, %c0_11] : memref<1x8xf32, #tpu.memory_space<vmem>>, vector<1x8xf32>
    %c0_12 = arith.constant 0 : index
    %c0_13 = arith.constant 0 : index
    %9 = vector.load %arg10[%c0_12, %c0_13] : memref<8x32xf32, #tpu.memory_space<vmem>>, vector<8x32xf32>
    %c0_i32_14 = arith.constant 0 : i32
    %10 = arith.index_cast %c0_i32_14 : i32 to index
    %c0_15 = arith.constant 0 : index
    %c0_16 = arith.constant 0 : index
    %11 = vector.load %arg1[%10, %c0_15, %c0_16] : memref<1x8x32xf32, #tpu.memory_space<vmem>>, vector<1x8x32xf32>
    %12 = vector.shape_cast %11 : vector<1x8x32xf32> to vector<8x32xf32>
    %cst = arith.constant dense<0.000000e+00> : vector<8x32xf32>
    %13 = tpu.matmul %12, %3, %cst {dimension_numbers = #tpu.dot_dimension_numbers<[1], [0], [0], [1], [0, 0, 1, 1], [], []>} : vector<8x32xf32>, vector<32x32xf32>, vector<8x32xf32> -> vector<8x32xf32>
    %14 = vector.broadcast %4 : vector<1x32xf32> to vector<8x32xf32>
    %15 = arith.addf %13, %14 : vector<8x32xf32>
    %cst_17 = arith.constant 0.000000e+00 : f32
    %16 = vector.broadcast %cst_17 : f32 to vector<8x32xf32>
    %17 = arith.maximumf %15, %16 : vector<8x32xf32>
    %18 = tpu.concatenate %17, %9 in 1 : vector<8x32xf32>, vector<8x32xf32> -> vector<8x64xf32>
    %cst_18 = arith.constant dense<0.000000e+00> : vector<8x512xf32>
    %19 = tpu.matmul %18, %5, %cst_18 {dimension_numbers = #tpu.dot_dimension_numbers<[1], [0], [0], [1], [0, 0, 1, 1], [], []>} : vector<8x64xf32>, vector<64x512xf32>, vector<8x512xf32> -> vector<8x512xf32>
    %20 = vector.broadcast %6 : vector<1x512xf32> to vector<8x512xf32>
    %21 = arith.addf %19, %20 : vector<8x512xf32>
    %22 = vector.extract_strided_slice %21 {offsets = [0, 0], sizes = [8, 32], strides = [1, 1]} : vector<8x512xf32> to vector<8x32xf32>
    %23 = arith.negf %22 : vector<8x32xf32>
    %24 = math.exp %23 : vector<8x32xf32>
    %cst_19 = arith.constant 1.000000e+00 : f32
    %25 = vector.broadcast %cst_19 : f32 to vector<8x32xf32>
    %26 = arith.addf %25, %24 : vector<8x32xf32>
    %27 = arith.divf %25, %26 : vector<8x32xf32>
    %28 = vector.extract_strided_slice %21 {offsets = [0, 128], sizes = [8, 32], strides = [1, 1]} : vector<8x512xf32> to vector<8x32xf32>
    %29 = arith.negf %28 : vector<8x32xf32>
    %30 = math.exp %29 : vector<8x32xf32>
    %cst_20 = arith.constant 1.000000e+00 : f32
    %31 = vector.broadcast %cst_20 : f32 to vector<8x32xf32>
    %32 = arith.addf %31, %30 : vector<8x32xf32>
    %33 = arith.divf %31, %32 : vector<8x32xf32>
    %34 = vector.extract_strided_slice %21 {offsets = [0, 256], sizes = [8, 32], strides = [1, 1]} : vector<8x512xf32> to vector<8x32xf32>
    %35 = vector.extract_strided_slice %21 {offsets = [0, 384], sizes = [8, 32], strides = [1, 1]} : vector<8x512xf32> to vector<8x32xf32>
    %36 = arith.mulf %33, %35 : vector<8x32xf32>
    %37 = arith.addf %34, %36 : vector<8x32xf32>
    %38 = math.tanh %37 : vector<8x32xf32>
    %39 = arith.subf %9, %38 : vector<8x32xf32>
    %40 = arith.mulf %27, %39 : vector<8x32xf32>
    %41 = arith.addf %38, %40 : vector<8x32xf32>
    %cst_21 = arith.constant dense<0.000000e+00> : vector<8x8xf32>
    %42 = tpu.matmul %41, %7, %cst_21 {dimension_numbers = #tpu.dot_dimension_numbers<[1], [0], [0], [1], [0, 0, 1, 1], [], []>} : vector<8x32xf32>, vector<32x8xf32>, vector<8x8xf32> -> vector<8x8xf32>
    %43 = vector.broadcast %8 : vector<1x8xf32> to vector<8x8xf32>
    %44 = arith.addf %42, %43 : vector<8x8xf32>
    %45 = arith.index_cast %c0_i32_14 : i32 to index
    %c0_22 = arith.constant 0 : index
    %c0_23 = arith.constant 0 : index
    %46 = vector.load %arg9[%45, %c0_22, %c0_23] : memref<1x8x8xf32, #tpu.memory_space<vmem>>, vector<1x8x8xf32>
    %47 = vector.shape_cast %46 : vector<1x8x8xf32> to vector<8x8xf32>
    %48 = vector.shape_cast %44 : vector<8x8xf32> to vector<1x8x8xf32>
    tpu.vector_store %arg9[%45, %c0_22, %c0_23], %48 {strides = array<i32>} : memref<1x8x8xf32, #tpu.memory_space<vmem>>, vector<1x8x8xf32>,
    %c1_i32 = arith.constant 1 : i32
    %c0_24 = arith.constant 0 : index
    %c0_25 = arith.constant 0 : index
    %49 = vector.load %arg10[%c0_24, %c0_25] : memref<8x32xf32, #tpu.memory_space<vmem>>, vector<8x32xf32>
    tpu.vector_store %arg10[%c0_24, %c0_25], %41 {strides = array<i32>} : memref<8x32xf32, #tpu.memory_space<vmem>>, vector<8x32xf32>,
    return
  }
  func.func @transform_0(%arg0: i32) -> (i32, i32, i32) {
    %c0_i32 = arith.constant 0 : i32
    %c0_i32_0 = arith.constant 0 : i32
    %c0_i32_1 = arith.constant 0 : i32
    return %arg0, %c0_i32, %c0_i32_0 : i32, i32, i32
  }
  func.func @transform_1(%arg0: i32) -> (i32, i32) {
    %c0_i32 = arith.constant 0 : i32
    %c0_i32_0 = arith.constant 0 : i32
    %c0_i32_1 = arith.constant 0 : i32
    return %c0_i32, %c0_i32_0 : i32, i32
  }
  func.func @transform_2(%arg0: i32) -> (i32, i32) {
    %c0_i32 = arith.constant 0 : i32
    %c0_i32_0 = arith.constant 0 : i32
    %c0_i32_1 = arith.constant 0 : i32
    return %c0_i32, %c0_i32_0 : i32, i32
  }
  func.func @transform_3(%arg0: i32) -> (i32, i32) {
    %c0_i32 = arith.constant 0 : i32
    %c0_i32_0 = arith.constant 0 : i32
    %c0_i32_1 = arith.constant 0 : i32
    return %c0_i32, %c0_i32_0 : i32, i32
  }
  func.func @transform_4(%arg0: i32) -> (i32, i32) {
    %c0_i32 = arith.constant 0 : i32
    %c0_i32_0 = arith.constant 0 : i32
    %c0_i32_1 = arith.constant 0 : i32
    return %c0_i32, %c0_i32_0 : i32, i32
  }
  func.func @transform_5(%arg0: i32) -> (i32, i32) {
    %c0_i32 = arith.constant 0 : i32
    %c0_i32_0 = arith.constant 0 : i32
    %c0_i32_1 = arith.constant 0 : i32
    return %c0_i32, %c0_i32_0 : i32, i32
  }
  func.func @transform_6(%arg0: i32) -> (i32, i32) {
    %c0_i32 = arith.constant 0 : i32
    %c0_i32_0 = arith.constant 0 : i32
    %c0_i32_1 = arith.constant 0 : i32
    return %c0_i32, %c0_i32_0 : i32, i32
  }
  func.func @transform_7(%arg0: i32) -> (i32, i32) {
    %c0_i32 = arith.constant 0 : i32
    %c0_i32_0 = arith.constant 0 : i32
    %c0_i32_1 = arith.constant 0 : i32
    return %c0_i32, %c0_i32_0 : i32, i32
  }
  func.func @transform_8(%arg0: i32) -> (i32, i32, i32) {
    %c0_i32 = arith.constant 0 : i32
    %c0_i32_0 = arith.constant 0 : i32
    %c0_i32_1 = arith.constant 0 : i32
    return %arg0, %c0_i32, %c0_i32_0 : i32, i32, i32
  }
  func.func @transform_9(%arg0: i32) -> (i32, i32) {
    %c0_i32 = arith.constant 0 : i32
    %c0_i32_0 = arith.constant 0 : i32
    %c0_i32_1 = arith.constant 0 : i32
    return %c0_i32, %c0_i32_0 : i32, i32
  }
}

</mosaic_0001>

<llo_original>
// kernel: tpu_custom_call.1
$region0: #{tpu_custom_call.1}
  #allocation0 [shape = 'u32[]', space=smem, size = 0x4, offset = 0x4, fixed_abs, tag = 'smem constant byte address 0x4 - core index']
  #allocation1 [shape = 'u32[144,128]{1,0:T(1,128)}', space=vmem, size = 0x12000, scoped, tag = 'internal scratch']
  %s0 = inlined_call_operand.vmem [shape: f32[1,8,32], index: 0, kind: input, shape index: {}]
  %s1 = inlined_call_operand.hbm [shape: f32[8,32], index: 1, kind: input, shape index: {}]
  %s2 = inlined_call_operand.vmem [shape: f32[32,32], index: 2, kind: input, shape index: {}]
  %s3 = inlined_call_operand.vmem [shape: f32[1,32], index: 3, kind: input, shape index: {}]
  %s4 = inlined_call_operand.hbm [shape: f32[64,512], index: 4, kind: input, shape index: {}]
  %s5 = inlined_call_operand.vmem [shape: f32[1,512], index: 5, kind: input, shape index: {}]
  %s6 = inlined_call_operand.vmem [shape: f32[32,8], index: 6, kind: input, shape index: {}]
  %s7 = inlined_call_operand.vmem [shape: f32[1,8], index: 7, kind: input, shape index: {}]
  %s8 = inlined_call_operand.hbm [shape: f32[1,8,8], index: 8, kind: output, shape index: {0}]
  %s9 = inlined_call_operand.hbm [shape: f32[8,32], index: 9, kind: output, shape index: {1}]
  %10 = xla_tuple %s8, %s9
  %s11 = sld [smem:[#allocation0]]
  $region62: #{tpu_custom_call.1} parent=0
    _
  %s13 = ssub.s32 1, %s11
  %s14 = scalar_select 0, %s13, %s11
  $region1: #{tpu_custom_call.1} parent=0
    #allocation2 [shape = 'u8[4096]{0}', space=vmem, size = 0x1000, scoped, tag = 'input window, operand 1, single buffered']
    #allocation3 [shape = 's32[1]{0}', space=sflag, size = 0x4, scoped, tag = 'scoped memory for tpu_custom_call.1']
    #allocation4 [shape = 's32[1]{0}', space=sflag, size = 0x4, scoped, tag = 'scoped memory for tpu_custom_call.1']
    #allocation5 [shape = 'u8[131072]{0}', space=vmem, size = 0x20000, scoped, tag = 'input window, operand 4, single buffered']
    #allocation6 [shape = 's32[1]{0}', space=sflag, size = 0x4, scoped, tag = 'scoped memory for tpu_custom_call.1']
    #allocation7 [shape = 'u8[4096]{0}', space=vmem, size = 0x1000, scoped, tag = 'output window, operand 0, single buffered']
    #allocation8 [shape = 'u8[4096]{0}', space=vmem, size = 0x1000, scoped, tag = 'output window, operand 1, single buffered']
    #allocation9 [shape = 's32[1]{0}', space=sflag, size = 0x4, scoped, tag = 'scoped memory for tpu_custom_call.1']
    %15 = vsyncpa [#allocation3], 0
    %16 = vsyncpa [#allocation6], 0
    %17 = vsyncpa [#allocation4], 0
    %18 = vsyncpa [#allocation9], 0
    // Predicated region
    $region2: #{tpu_custom_call.1} parent=1 // pred_check
      _
    $region3: #{tpu_custom_call.1} parent=1 // pred_check_branch
      %20 = sbr.rel (0) target = $region5
    $region4: #{tpu_custom_call.1} parent=1 // pred_region
      _
    $region5: #{tpu_custom_call.1} parent=1 // pred_fallthru
      _
    // Predicated region
    $region6: #{tpu_custom_call.1} parent=1 // pred_check
      _
    $region7: #{tpu_custom_call.1} parent=1 // pred_check_branch
      %22 = sbr.rel (0) target = $region9
    $region8: #{tpu_custom_call.1} parent=1 // pred_region
      %s24 = ssub.s32 128, 128
      %25 = vsyncadd [#allocation3], %s24
      %s27 = sshll.u32 [#allocation2], 4
      %s28 = int_to_ptr.vmem [resolvable:$true] %s27
      %30 = dma.hbm_to_vmem [thread:$0]  %s1, 128, %s28, [#allocation3]
    $region9: #{tpu_custom_call.1} parent=1 // pred_fallthru
      _
    // Predicated region
    $region10: #{tpu_custom_call.1} parent=1 // pred_check
      _
    $region11: #{tpu_custom_call.1} parent=1 // pred_check_branch
      %32 = sbr.rel (0) target = $region13
    $region12: #{tpu_custom_call.1} parent=1 // pred_region
      _
    $region13: #{tpu_custom_call.1} parent=1 // pred_fallthru
      _
    // Predicated region
    $region14: #{tpu_custom_call.1} parent=1 // pred_check
      _
    $region15: #{tpu_custom_call.1} parent=1 // pred_check_branch
      %34 = sbr.rel (0) target = $region17
    $region16: #{tpu_custom_call.1} parent=1 // pred_region
      _
    $region17: #{tpu_custom_call.1} parent=1 // pred_fallthru
      _
    // Predicated region
    $region18: #{tpu_custom_call.1} parent=1 // pred_check
      _
    $region19: #{tpu_custom_call.1} parent=1 // pred_check_branch
      %36 = sbr.rel (0) target = $region21
    $region20: #{tpu_custom_call.1} parent=1 // pred_region
      %s38 = ssub.s32 4096, 4096
      %39 = vsyncadd [#allocation6], %s38
      %s40 = sshll.u32 [#allocation5], 4
      %s41 = int_to_ptr.vmem [resolvable:$true] %s40
      %46 = dma.hbm_to_vmem [thread:$0]  %s4, 4096, %s41, [#allocation6], 512, 512, 32
    $region21: #{tpu_custom_call.1} parent=1 // pred_fallthru
      _
    // Predicated region
    $region22: #{tpu_custom_call.1} parent=1 // pred_check
      _
    $region23: #{tpu_custom_call.1} parent=1 // pred_check_branch
      %48 = sbr.rel (0) target = $region25
    $region24: #{tpu_custom_call.1} parent=1 // pred_region
      _
    $region25: #{tpu_custom_call.1} parent=1 // pred_fallthru
      _
    // Predicated region
    $region26: #{tpu_custom_call.1} parent=1 // pred_check
      _
    $region27: #{tpu_custom_call.1} parent=1 // pred_check_branch
      %50 = sbr.rel (0) target = $region29
    $region28: #{tpu_custom_call.1} parent=1 // pred_region
      _
    $region29: #{tpu_custom_call.1} parent=1 // pred_fallthru
      _
    // Predicated region
    $region30: #{tpu_custom_call.1} parent=1 // pred_check
      _
    $region31: #{tpu_custom_call.1} parent=1 // pred_check_branch
      %52 = sbr.rel (0) target = $region33
    $region32: #{tpu_custom_call.1} parent=1 // pred_region
      _
    $region33: #{tpu_custom_call.1} parent=1 // pred_fallthru
      _
    // Predicated region
    $region34: #{tpu_custom_call.1} parent=1 // pred_check
      _
    $region35: #{tpu_custom_call.1} parent=1 // pred_check_branch
      %54 = sbr.rel (0) target = $region37
    $region36: #{tpu_custom_call.1} parent=1 // pred_region
      %55 = dma.done [#allocation3], 128
    $region37: #{tpu_custom_call.1} parent=1 // pred_fallthru
      _
    // Predicated region
    $region38: #{tpu_custom_call.1} parent=1 // pred_check
      _
    $region39: #{tpu_custom_call.1} parent=1 // pred_check_branch
      %57 = sbr.rel (0) target = $region41
    $region40: #{tpu_custom_call.1} parent=1 // pred_region
      %58 = dma.done [#allocation6], 4096
    $region41: #{tpu_custom_call.1} parent=1 // pred_fallthru
      _
    %p59 = scmp.eq.s32.totalorder 0, 0
    // Predicated region
    $region42: #{tpu_custom_call.1} parent=1 // pred_check
      %p60 = pneg %p59
    $region43: #{tpu_custom_call.1} parent=1 // pred_check_branch
      %62 = sbr.rel (%p60) target = $region45
    $region44: #{tpu_custom_call.1} parent=1 // pred_region
      %v63 = vld [vmem:[#allocation2] sm:$0xff]
      %vm64 = vcmask 261120
      %65 = vst.msk [vmem:[#allocation8] sm:$0xff] %vm64, %v63
    $region45: #{tpu_custom_call.1} parent=1 // pred_fallthru
      _
    %v66 = vld [vmem:[%s2] sm:$0xff]
    %v67 = vld [vmem:[%s2 + $0x8] sm:$0xff]
    %v68 = vld [vmem:[%s2 + $0x10] sm:$0xff]
    %v69 = vld [vmem:[%s2 + $0x18] sm:$0xff]
    %v70 = vld [vmem:[%s3] sm:$0x1]
    %v71 = vld [vmem:[#allocation5] sm:$0xff]
    %v72 = vld [vmem:[#allocation5 + $0x8] sm:$0xff]
    %v73 = vld [vmem:[#allocation5 + $0x10] sm:$0xff]
    %v74 = vld [vmem:[#allocation5 + $0x18] sm:$0xff]
    %v75 = vld [vmem:[#allocation5 + $0x20] sm:$0xff]
    %v76 = vld [vmem:[#allocation5 + $0x28] sm:$0xff]
    %v77 = vld [vmem:[#allocation5 + $0x30] sm:$0xff]
    %v78 = vld [vmem:[#allocation5 + $0x38] sm:$0xff]
    %v79 = vld [vmem:[#allocation5 + $0x40] sm:$0xff]
    %v80 = vld [vmem:[#allocation5 + $0x48] sm:$0xff]
    %v81 = vld [vmem:[#allocation5 + $0x50] sm:$0xff]
    %v82 = vld [vmem:[#allocation5 + $0x58] sm:$0xff]
    %v83 = vld [vmem:[#allocation5 + $0x60] sm:$0xff]
    %v84 = vld [vmem:[#allocation5 + $0x68] sm:$0xff]
    %v85 = vld [vmem:[#allocation5 + $0x70] sm:$0xff]
    %v86 = vld [vmem:[#allocation5 + $0x78] sm:$0xff]
    %v87 = vld [vmem:[#allocation5 + $0x80] sm:$0xff]
    %v88 = vld [vmem:[#allocation5 + $0x88] sm:$0xff]
    %v89 = vld [vmem:[#allocation5 + $0x90] sm:$0xff]
    %v90 = vld [vmem:[#allocation5 + $0x98] sm:$0xff]
    %v91 = vld [vmem:[#allocation5 + $0xa0] sm:$0xff]
    %v92 = vld [vmem:[#allocation5 + $0xa8] sm:$0xff]
    %v93 = vld [vmem:[#allocation5 + $0xb0] sm:$0xff]
    %v94 = vld [vmem:[#allocation5 + $0xb8] sm:$0xff]
    %v95 = vld [vmem:[#allocation5 + $0xc0] sm:$0xff]
    %v96 = vld [vmem:[#allocation5 + $0xc8] sm:$0xff]
    %v97 = vld [vmem:[#allocation5 + $0xd0] sm:$0xff]
    %v98 = vld [vmem:[#allocation5 + $0xd8] sm:$0xff]
    %v99 = vld [vmem:[#allocation5 + $0xe0] sm:$0xff]
    %v100 = vld [vmem:[#allocation5 + $0xe8] sm:$0xff]
    %v101 = vld [vmem:[#allocation5 + $0xf0] sm:$0xff]
    %v102 = vld [vmem:[#allocation5 + $0xf8] sm:$0xff]
    %v103 = vld [vmem:[%s5] sm:$0xf]
    %v104 = vld [vmem:[%s6] sm:$0xff]
    %v105 = vld [vmem:[%s6 + $0x8] sm:$0xff]
    %v106 = vld [vmem:[%s6 + $0x10] sm:$0xff]
    %v107 = vld [vmem:[%s6 + $0x18] sm:$0xff]
    %v108 = vld [vmem:[%s7] sm:$0x1]
    %v109 = vld [vmem:[#allocation8] sm:$0xff]
    %v110 = vld [vmem:[%s0] sm:$0xff]
    %v112 = vlaneseq
    %v113 = vshrl.u32 %v112, 7
    %v114 = vsub.s32 0, %v113
    %v115 = vrot.slane %v70, %v114
    %vm117 = vcmask 261120
    %v119 = vsel %vm117, %v110, 0
    %121 = vmatprep.subr.mxu0 0.0
    %122 = vmatpush1.msra.mxu0 %v66
    %123 = vmatprep.subr.mxu0 0.0
    %124 = vmatpush1.msra.mxu0 %v67
    %125 = vmatprep.subr.mxu0 0.0
    %126 = vmatpush1.msra.mxu0 %v68
    %127 = vmatprep.subr.mxu0 0.0
    %128 = vmatpush1.msra.mxu0 %v69
    %129 = vmatprep.subr.mxu0 0.0
    %130 = vmatpush1.msra.mxu0 0.0
    %131 = vmatprep.subr.mxu0 0.0
    %132 = vmatpush1.msra.mxu0 0.0
    %133 = vmatprep.subr.mxu0 0.0
    %134 = vmatpush1.msra.mxu0 0.0
    %135 = vmatprep.subr.mxu0 0.0
    %136 = vmatpush1.msra.mxu0 0.0
    %137 = vmatprep.subr.mxu0 0.0
    %138 = vmatpush1.msra.mxu0 0.0
    %139 = vmatprep.subr.mxu0 0.0
    %140 = vmatpush1.msra.mxu0 0.0
    %141 = vmatprep.subr.mxu0 0.0
    %142 = vmatpush1.msra.mxu0 0.0
    %143 = vmatprep.subr.mxu0 0.0
    %144 = vmatpush1.msra.mxu0 0.0
    %145 = vmatprep.subr.mxu0 0.0
    %146 = vmatpush1.msra.mxu0 0.0
    %147 = vmatprep.subr.mxu0 0.0
    %148 = vmatpush1.msra.mxu0 0.0
    %149 = vmatprep.subr.mxu0 0.0
    %150 = vmatpush1.msra.mxu0 0.0
    %151 = vmatprep.subr.mxu0 0.0
    %152 = vmatpush1.msra.mxu0 0.0
    %153 = vmatprep.subr.mxu0 0.0
    %154 = vmatpush1.msra.mxu0 0.0
    %155 = vmatprep.subr.mxu0 0.0
    %156 = vmatpush1.msra.mxu0 0.0
    %157 = vmatprep.subr.mxu0 0.0
    %158 = vmatpush1.msra.mxu0 0.0
    %159 = vmatprep.subr.mxu0 0.0
    %160 = vmatpush1.msra.mxu0 0.0
    %161 = vmatprep.subr.mxu0 0.0
    %162 = vmatpush1.msra.mxu0 0.0
    %163 = vmatprep.subr.mxu0 0.0
    %164 = vmatpush1.msra.mxu0 0.0
    %165 = vmatprep.subr.mxu0 0.0
    %166 = vmatpush1.msra.mxu0 0.0
    %167 = vmatprep.subr.mxu0 0.0
    %168 = vmatpush1.msra.mxu0 0.0
    %169 = vmatprep.subr.mxu0 0.0
    %170 = vmatpush1.msra.mxu0 0.0
    %171 = vmatprep.subr.mxu0 0.0
    %172 = vmatpush1.msra.mxu0 0.0
    %173 = vmatprep.subr.mxu0 0.0
    %174 = vmatpush1.msra.mxu0 0.0
    %175 = vmatprep.subr.mxu0 0.0
    %176 = vmatpush1.msra.mxu0 0.0
    %177 = vmatprep.subr.mxu0 0.0
    %178 = vmatpush1.msra.mxu0 0.0
    %179 = vmatprep.subr.mxu0 0.0
    %180 = vmatpush1.msra.mxu0 0.0
    %181 = vmatprep.subr.mxu0 0.0
    %182 = vmatpush1.msra.mxu0 0.0
    %183 = vmatprep.subr.mxu0 0.0
    %184 = vmatpush1.msra.mxu0 0.0
    %185 = vmatprep.mubr.f32.mxu0 0.0
    %186 = vmatmul.mubr.f32.gmra.mrb[0].mxu0 %v119
    %v187 = vpop.f32.mrb[0].mxu0
    %v188 = vadd.f32 %v115, %v187
    %v189 = vpop.f32.mrb[0].mxu0
    %190 = vdwg.mxu0
    %v191 = vmax.f32 %v188, 0.0
    %193 = vrot.lane.b32.xlu0 %v109, 32
    %v194 = vpop.permute.xlu0 %193
    %v196 = vsel %vm117, %v191, %v194
    %v198 = vlaneseq
    %v199 = vshrl.u32 %v198, 7
    %v200 = vsub.s32 0, %v199
    %v201 = vrot.slane %v103, %v200
    %v202 = vlaneseq
    %v203 = vshrl.u32 %v202, 7
    %v204 = vsub.s32 1, %v203
    %v205 = vrot.slane %v103, %v204
    %v206 = vlaneseq
    %v207 = vshrl.u32 %v206, 7
    %v208 = vsub.s32 2, %v207
    %v209 = vrot.slane %v103, %v208
    %v210 = vlaneseq
    %v211 = vshrl.u32 %v210, 7
    %v212 = vsub.s32 3, %v211
    %v213 = vrot.slane %v103, %v212
    %vm218 = vcmask 523264
    %v220 = vsel %vm218, %v196, 0
    %222 = vmatprep.subr.mxu0 %v72
    %223 = vmatpush1.msra.mxu0 %v71
    %224 = vmatprep.subr.mxu0 %v76
    %225 = vmatpush1.msra.mxu0 %v75
    %226 = vmatprep.subr.mxu0 %v80
    %227 = vmatpush1.msra.mxu0 %v79
    %228 = vmatprep.subr.mxu0 %v84
    %229 = vmatpush1.msra.mxu0 %v83
    %230 = vmatprep.subr.mxu0 %v88
    %231 = vmatpush1.msra.mxu0 %v87
    %232 = vmatprep.subr.mxu0 %v92
    %233 = vmatpush1.msra.mxu0 %v91
    %234 = vmatprep.subr.mxu0 %v96
    %235 = vmatpush1.msra.mxu0 %v95
    %236 = vmatprep.subr.mxu0 %v100
    %237 = vmatpush1.msra.mxu0 %v99
    %238 = vmatprep.subr.mxu0 0.0
    %239 = vmatpush1.msra.mxu0 0.0
    %240 = vmatprep.subr.mxu0 0.0
    %241 = vmatpush1.msra.mxu0 0.0
    %242 = vmatprep.subr.mxu0 0.0
    %243 = vmatpush1.msra.mxu0 0.0
    %244 = vmatprep.subr.mxu0 0.0
    %245 = vmatpush1.msra.mxu0 0.0
    %246 = vmatprep.subr.mxu0 0.0
    %247 = vmatpush1.msra.mxu0 0.0
    %248 = vmatprep.subr.mxu0 0.0
    %249 = vmatpush1.msra.mxu0 0.0
    %250 = vmatprep.subr.mxu0 0.0
    %251 = vmatpush1.msra.mxu0 0.0
    %252 = vmatprep.subr.mxu0 0.0
    %253 = vmatpush1.msra.mxu0 0.0
    %254 = vmatprep.subr.mxu0 0.0
    %255 = vmatpush1.msra.mxu0 0.0
    %256 = vmatprep.subr.mxu0 0.0
    %257 = vmatpush1.msra.mxu0 0.0
    %258 = vmatprep.subr.mxu0 0.0
    %259 = vmatpush1.msra.mxu0 0.0
    %260 = vmatprep.subr.mxu0 0.0
    %261 = vmatpush1.msra.mxu0 0.0
    %262 = vmatprep.subr.mxu0 0.0
    %263 = vmatpush1.msra.mxu0 0.0
    %264 = vmatprep.subr.mxu0 0.0
    %265 = vmatpush1.msra.mxu0 0.0
    %266 = vmatprep.subr.mxu0 0.0
    %267 = vmatpush1.msra.mxu0 0.0
    %268 = vmatprep.subr.mxu0 0.0
    %269 = vmatpush1.msra.mxu0 0.0
    %270 = vmatprep.subr.mxu0 0.0
    %271 = vmatpush1.msra.mxu0 0.0
    %272 = vmatprep.subr.mxu0 0.0
    %273 = vmatpush1.msra.mxu0 0.0
    %274 = vmatprep.subr.mxu0 0.0
    %275 = vmatpush1.msra.mxu0 0.0
    %276 = vmatprep.subr.mxu0 0.0
    %277 = vmatpush1.msra.mxu0 0.0
    %278 = vmatprep.subr.mxu0 0.0
    %279 = vmatpush1.msra.mxu0 0.0
    %280 = vmatprep.subr.mxu0 0.0
    %281 = vmatpush1.msra.mxu0 0.0
    %282 = vmatprep.subr.mxu0 0.0
    %283 = vmatpush1.msra.mxu0 0.0
    %284 = vmatprep.subr.mxu0 0.0
    %285 = vmatpush1.msra.mxu0 0.0
    %286 = vmatprep.mubr.f32.mxu0 0.0
    %287 = vmatmul.mubr.f32.gmra.mrb[0].mxu0 %v220
    %v288 = vpop.f32.mrb[0].mxu0
    %v289 = vadd.f32 %v201, %v288
    %v290 = vpop.f32.mrb[0].mxu0
    %v291 = vadd.f32 %v205, %v290
    %292 = vdwg.mxu0
    %293 = vmatprep.subr.mxu0 %v74
    %294 = vmatpush1.msra.mxu0 %v73
    %295 = vmatprep.subr.mxu0 %v78
    %296 = vmatpush1.msra.mxu0 %v77
    %297 = vmatprep.subr.mxu0 %v82
    %298 = vmatpush1.msra.mxu0 %v81
    %299 = vmatprep.subr.mxu0 %v86
    %300 = vmatpush1.msra.mxu0 %v85
    %301 = vmatprep.subr.mxu0 %v90
    %302 = vmatpush1.msra.mxu0 %v89
    %303 = vmatprep.subr.mxu0 %v94
    %304 = vmatpush1.msra.mxu0 %v93
    %305 = vmatprep.subr.mxu0 %v98
    %306 = vmatpush1.msra.mxu0 %v97
    %307 = vmatprep.subr.mxu0 %v102
    %308 = vmatpush1.msra.mxu0 %v101
    %309 = vmatprep.subr.mxu0 0.0
    %310 = vmatpush1.msra.mxu0 0.0
    %311 = vmatprep.subr.mxu0 0.0
    %312 = vmatpush1.msra.mxu0 0.0
    %313 = vmatprep.subr.mxu0 0.0
    %314 = vmatpush1.msra.mxu0 0.0
    %315 = vmatprep.subr.mxu0 0.0
    %316 = vmatpush1.msra.mxu0 0.0
    %317 = vmatprep.subr.mxu0 0.0
    %318 = vmatpush1.msra.mxu0 0.0
    %319 = vmatprep.subr.mxu0 0.0
    %320 = vmatpush1.msra.mxu0 0.0
    %321 = vmatprep.subr.mxu0 0.0
    %322 = vmatpush1.msra.mxu0 0.0
    %323 = vmatprep.subr.mxu0 0.0
    %324 = vmatpush1.msra.mxu0 0.0
    %325 = vmatprep.subr.mxu0 0.0
    %326 = vmatpush1.msra.mxu0 0.0
    %327 = vmatprep.subr.mxu0 0.0
    %328 = vmatpush1.msra.mxu0 0.0
    %329 = vmatprep.subr.mxu0 0.0
    %330 = vmatpush1.msra.mxu0 0.0
    %331 = vmatprep.subr.mxu0 0.0
    %332 = vmatpush1.msra.mxu0 0.0
    %333 = vmatprep.subr.mxu0 0.0
    %334 = vmatpush1.msra.mxu0 0.0
    %335 = vmatprep.subr.mxu0 0.0
    %336 = vmatpush1.msra.mxu0 0.0
    %337 = vmatprep.subr.mxu0 0.0
    %338 = vmatpush1.msra.mxu0 0.0
    %339 = vmatprep.subr.mxu0 0.0
    %340 = vmatpush1.msra.mxu0 0.0
    %341 = vmatprep.subr.mxu0 0.0
    %342 = vmatpush1.msra.mxu0 0.0
    %343 = vmatprep.subr.mxu0 0.0
    %344 = vmatpush1.msra.mxu0 0.0
    %345 = vmatprep.subr.mxu0 0.0
    %346 = vmatpush1.msra.mxu0 0.0
    %347 = vmatprep.subr.mxu0 0.0
    %348 = vmatpush1.msra.mxu0 0.0
    %349 = vmatprep.subr.mxu0 0.0
    %350 = vmatpush1.msra.mxu0 0.0
    %351 = vmatprep.subr.mxu0 0.0
    %352 = vmatpush1.msra.mxu0 0.0
    %353 = vmatprep.subr.mxu0 0.0
    %354 = vmatpush1.msra.mxu0 0.0
    %355 = vmatprep.subr.mxu0 0.0
    %356 = vmatpush1.msra.mxu0 0.0
    %357 = vmatprep.mubr.f32.mxu0 0.0
    %358 = vmatmul.mubr.f32.gmra.mrb[0].mxu0 %v220
    %v359 = vpop.f32.mrb[0].mxu0
    %v360 = vadd.f32 %v209, %v359
    %v361 = vpop.f32.mrb[0].mxu0
    %v362 = vadd.f32 %v213, %v361
    %363 = vdwg.mxu0
    %v364 = vxor.u32 %v289, 2147483648
    %v365 = vmul.f32 %v364, 1.442695
    %v366 = vpow.pop %v365
    %v367 = vadd.f32 %v366, 1.0
    %v368 = vrcp.pop %v367
    %v369 = vmul.f32 1.0, %v368
    %v370 = vxor.u32 %v291, 2147483648
    %v371 = vmul.f32 %v370, 1.442695
    %v372 = vpow.pop %v371
    %v373 = vadd.f32 %v372, 1.0
    %v374 = vrcp.pop %v373
    %v375 = vmul.f32 1.0, %v374
    %v376 = vmul.f32 %v375, %v362
    %v377 = vadd.f32 %v360, %v376
    %v378 = vtanh.pop %v377
    %v379 = vsub.f32 %v109, %v378
    %v380 = vmul.f32 %v369, %v379
    %v381 = vadd.f32 %v378, %v380
    %v383 = vlaneseq
    %v384 = vshrl.u32 %v383, 7
    %v385 = vsub.s32 0, %v384
    %v386 = vrot.slane %v108, %v385
    %v389 = vsel %vm117, %v381, 0
    %391 = vmatprep.subr.mxu0 0.0
    %392 = vmatpush1.msra.mxu0 %v104
    %393 = vmatprep.subr.mxu0 0.0
    %394 = vmatpush1.msra.mxu0 %v105
    %395 = vmatprep.subr.mxu0 0.0
    %396 = vmatpush1.msra.mxu0 %v106
    %397 = vmatprep.subr.mxu0 0.0
    %398 = vmatpush1.msra.mxu0 %v107
    %399 = vmatprep.subr.mxu0 0.0
    %400 = vmatpush1.msra.mxu0 0.0
    %401 = vmatprep.subr.mxu0 0.0
    %402 = vmatpush1.msra.mxu0 0.0
    %403 = vmatprep.subr.mxu0 0.0
    %404 = vmatpush1.msra.mxu0 0.0
    %405 = vmatprep.subr.mxu0 0.0
    %406 = vmatpush1.msra.mxu0 0.0
    %407 = vmatprep.subr.mxu0 0.0
    %408 = vmatpush1.msra.mxu0 0.0
    %409 = vmatprep.subr.mxu0 0.0
    %410 = vmatpush1.msra.mxu0 0.0
    %411 = vmatprep.subr.mxu0 0.0
    %412 = vmatpush1.msra.mxu0 0.0
    %413 = vmatprep.subr.mxu0 0.0
    %414 = vmatpush1.msra.mxu0 0.0
    %415 = vmatprep.subr.mxu0 0.0
    %416 = vmatpush1.msra.mxu0 0.0
    %417 = vmatprep.subr.mxu0 0.0
    %418 = vmatpush1.msra.mxu0 0.0
    %419 = vmatprep.subr.mxu0 0.0
    %420 = vmatpush1.msra.mxu0 0.0
    %421 = vmatprep.subr.mxu0 0.0
    %422 = vmatpush1.msra.mxu0 0.0
    %423 = vmatprep.subr.mxu0 0.0
    %424 = vmatpush1.msra.mxu0 0.0
    %425 = vmatprep.subr.mxu0 0.0
    %426 = vmatpush1.msra.mxu0 0.0
    %427 = vmatprep.subr.mxu0 0.0
    %428 = vmatpush1.msra.mxu0 0.0
    %429 = vmatprep.subr.mxu0 0.0
    %430 = vmatpush1.msra.mxu0 0.0
    %431 = vmatprep.subr.mxu0 0.0
    %432 = vmatpush1.msra.mxu0 0.0
    %433 = vmatprep.subr.mxu0 0.0
    %434 = vmatpush1.msra.mxu0 0.0
    %435 = vmatprep.subr.mxu0 0.0
    %436 = vmatpush1.msra.mxu0 0.0
    %437 = vmatprep.subr.mxu0 0.0
    %438 = vmatpush1.msra.mxu0 0.0
    %439 = vmatprep.subr.mxu0 0.0
    %440 = vmatpush1.msra.mxu0 0.0
    %441 = vmatprep.subr.mxu0 0.0
    %442 = vmatpush1.msra.mxu0 0.0
    %443 = vmatprep.subr.mxu0 0.0
    %444 = vmatpush1.msra.mxu0 0.0
    %445 = vmatprep.subr.mxu0 0.0
    %446 = vmatpush1.msra.mxu0 0.0
    %447 = vmatprep.subr.mxu0 0.0
    %448 = vmatpush1.msra.mxu0 0.0
    %449 = vmatprep.subr.mxu0 0.0
    %450 = vmatpush1.msra.mxu0 0.0
    %451 = vmatprep.subr.mxu0 0.0
    %452 = vmatpush1.msra.mxu0 0.0
    %453 = vmatprep.subr.mxu0 0.0
    %454 = vmatpush1.msra.mxu0 0.0
    %455 = vmatprep.mubr.f32.mxu0 0.0
    %456 = vmatmul.mubr.f32.gmra.mrb[0].mxu0 %v389
    %v457 = vpop.f32.mrb[0].mxu0
    %v458 = vadd.f32 %v386, %v457
    %v459 = vpop.f32.mrb[0].mxu0
    %460 = vdwg.mxu0
    %vm461 = vcmask 64512
    %462 = vst.msk [vmem:[#allocation7] sm:$0xff] %vm461, %v458
    %463 = vst.msk [vmem:[#allocation8] sm:$0xff] %vm117, %v381
    // Predicated region
    $region46: #{tpu_custom_call.1} parent=1 // pred_check
      _
    $region47: #{tpu_custom_call.1} parent=1 // pred_check_branch
      %465 = sbr.rel (0) target = $region49
    $region48: #{tpu_custom_call.1} parent=1 // pred_region
      %s467 = ssub.s32 128, 128
      %468 = vsyncadd [#allocation4], %s467
      %s470 = sshll.u32 [#allocation7], 4
      %s471 = int_to_ptr.vmem [resolvable:$true] %s470
      %473 = dma.vmem_to_hbm [thread:$0]  %s471, 128, %s8, [#allocation4]
    $region49: #{tpu_custom_call.1} parent=1 // pred_fallthru
      _
    // Predicated region
    $region50: #{tpu_custom_call.1} parent=1 // pred_check
      _
    $region51: #{tpu_custom_call.1} parent=1 // pred_check_branch
      %475 = sbr.rel (0) target = $region53
    $region52: #{tpu_custom_call.1} parent=1 // pred_region
      %s477 = ssub.s32 128, 128
      %478 = vsyncadd [#allocation9], %s477
      %s480 = sshll.u32 [#allocation8], 4
      %s481 = int_to_ptr.vmem [resolvable:$true] %s480
      %483 = dma.vmem_to_hbm [thread:$0]  %s481, 128, %s9, [#allocation9]
    $region53: #{tpu_custom_call.1} parent=1 // pred_fallthru
      _
    // Predicated region
    $region54: #{tpu_custom_call.1} parent=1 // pred_check
      _
    $region55: #{tpu_custom_call.1} parent=1 // pred_check_branch
      %485 = sbr.rel (0) target = $region57
    $region56: #{tpu_custom_call.1} parent=1 // pred_region
      %486 = dma.done [#allocation4], 128
    $region57: #{tpu_custom_call.1} parent=1 // pred_fallthru
      _
    // Predicated region
    $region58: #{tpu_custom_call.1} parent=1 // pred_check
      _
    $region59: #{tpu_custom_call.1} parent=1 // pred_check_branch
      %488 = sbr.rel (0) target = $region61
    $region60: #{tpu_custom_call.1} parent=1 // pred_region
      %489 = dma.done [#allocation9], 128
    $region61: #{tpu_custom_call.1} parent=1 // pred_fallthru
      _
    %490 = vsyncpa [#allocation3], 1
    %491 = vsyncpa [#allocation6], 1
    %492 = vsyncpa [#allocation4], 1
    %493 = vsyncpa [#allocation9], 1

</llo_original>
